<compile_context>
chip_gen: v6e
topology: v6e:2x2x1
jax: 0.10.0
libtpu: 0.0.40
codegen_flags: <defaults>
</compile_context>

<pallas_src>
import jax
import jax.numpy as jnp
from jax.experimental import pallas as pl
from jax.experimental.pallas import tpu as pltpu

_LANE = 128   # lane width
_SUB = 8      # f32 sublane count


def _round_up(n, m):
    return ((n + m - 1) // m) * m


def _pad2d(a, rows, cols):
    return jnp.pad(a, ((0, rows - a.shape[0]), (0, cols - a.shape[1])))


def mlp_kernel(x_ref, w1_ref, b1_ref, w2_ref, b2_ref, o_ref):
    # fc1: (TB, Ip) @ (Ip, Hp) + (TB, Hp)   -- all tiles lane/sublane aligned
    h = jnp.dot(x_ref[...], w1_ref[...], preferred_element_type=jnp.float32)
    h = jnp.maximum(h + b1_ref[...], 0.0)          # ReLU, f32 epilogue
    # fc2: (TB, Hp) @ (Hp, Op) + (TB, Op)
    out = jnp.dot(h, w2_ref[...], preferred_element_type=jnp.float32)
    o_ref[...] = (out + b2_ref[...]).astype(o_ref.dtype)


def neural_net_forward(x, w1, b1, w2, b2, *, batch_tile=512):
    """Forward pass of NeuralNet as a single fused Pallas kernel.

    Args:
      x:  (B, In)  float32
      w1: (In, H)  float32  (transpose of PyTorch fc1.weight)
      b1: (H,)     float32
      w2: (H, Out) float32  (transpose of PyTorch fc2.weight)
      b2: (Out,)   float32
    Returns:
      (B, Out) float32
    """
    B, In = x.shape
    H = w1.shape[1]
    Out = w2.shape[1]

    # Lane-dense padded dims (zero padding keeps the math unchanged).
    Ip = _round_up(In, _LANE)
    Hp = _round_up(H, _LANE)
    Op = _round_up(Out, _LANE)

    small = B <= batch_tile
    if small:
        Bp = _round_up(B, _SUB)     # single shot, no grid
        TB = Bp                     # "block" batch == whole padded batch
    else:
        TB = batch_tile
        Bp = _round_up(B, TB)

    xp = _pad2d(x, Bp, Ip)
    w1p = _pad2d(w1, Ip, Hp)
    w2p = _pad2d(w2, Hp, Op)
    # Pre-broadcast biases to full block tiles -> plain full-vreg adds in-kernel.
    b1p = jnp.broadcast_to(jnp.pad(b1, (0, Hp - H))[None, :], (TB, Hp))
    b2p = jnp.broadcast_to(jnp.pad(b2, (0, Op - Out))[None, :], (TB, Op))

    bytes_accessed = 4 * (Bp * Ip + Ip * Hp + TB * Hp + Hp * Op + TB * Op + Bp * Op)
    cost = pl.CostEstimate(
        flops=2 * Bp * (Ip * Hp + Hp * Op),
        transcendentals=0,
        bytes_accessed=bytes_accessed,
    )

    if small:
        # No grid, no pipeline machinery: whole (padded) arrays live in VMEM.
        out_p = pl.pallas_call(
            mlp_kernel,
            out_shape=jax.ShapeDtypeStruct((Bp, Op), jnp.float32),
            in_specs=[pl.BlockSpec(memory_space=pltpu.MemorySpace.VMEM)] * 5,
            out_specs=pl.BlockSpec(memory_space=pltpu.MemorySpace.VMEM),
            cost_estimate=cost,
        )(xp, w1p, b1p, w2p, b2p)
    else:
        # Large batch: tile the batch axis; weights/biases stay resident
        # ((0,0) index maps -> fetched once). "parallel" lets v7x shard grid
        # steps across its 2 TensorCores.
        out_p = pl.pallas_call(
            mlp_kernel,
            out_shape=jax.ShapeDtypeStruct((Bp, Op), jnp.float32),
            grid=(Bp // TB,),
            in_specs=[
                pl.BlockSpec((TB, Ip), lambda i: (i, 0)),
                pl.BlockSpec((Ip, Hp), lambda i: (0, 0)),
                pl.BlockSpec((TB, Hp), lambda i: (0, 0)),
                pl.BlockSpec((Hp, Op), lambda i: (0, 0)),
                pl.BlockSpec((TB, Op), lambda i: (0, 0)),
            ],
            out_specs=pl.BlockSpec((TB, Op), lambda i: (i, 0)),
            compiler_params=pltpu.CompilerParams(
                dimension_semantics=("parallel",)
            ),
            cost_estimate=cost,
        )(xp, w1p, b1p, w2p, b2p)

    return out_p[:B, :Out]


if __name__ == "__main__":
    # Shapes consistent with the Titanic MLP: ~7 tabular features, small hidden.
    batch = 8
    input_size = 7
    hidden_size = 32
    output_size = 2

    key = jax.random.PRNGKey(0)
    kx, kw1, kb1, kw2, kb2 = jax.random.split(key, 5)

    x = jax.random.normal(kx, (batch, input_size), dtype=jnp.float32)
    # PyTorch fc weights are (out, in); generate directly in (in, out) layout.
    w1 = jax.random.normal(kw1, (input_size, hidden_size), dtype=jnp.float32) * 0.1
    b1 = jax.random.normal(kb1, (hidden_size,), dtype=jnp.float32) * 0.1
    w2 = jax.random.normal(kw2, (hidden_size, output_size), dtype=jnp.float32) * 0.1
    b2 = jax.random.normal(kb2, (output_size,), dtype=jnp.float32) * 0.1

    fwd = jax.jit(neural_net_forward)
    out = jax.block_until_ready(fwd(x, w1, b1, w2, b2))

    # Pure-JAX reference for correctness.
    ref = jnp.maximum(x @ w1 + b1, 0.0) @ w2 + b2
    assert out.shape == (batch, output_size)
    assert jnp.allclose(out, ref, atol=1e-5, rtol=1e-5), "mismatch vs reference"

    # Also exercise the batch-tiled (gridded) path once with a larger batch.
    big_B = 1024
    xb = jax.random.normal(kx, (big_B, input_size), dtype=jnp.float32)
    out_big = jax.block_until_ready(fwd(xb, w1, b1, w2, b2))
    ref_big = jnp.maximum(xb @ w1 + b1, 0.0) @ w2 + b2
    assert out_big.shape == (big_B, output_size)
    assert jnp.allclose(out_big, ref_big, atol=1e-5, rtol=1e-5), "tiled path mismatch"

    print("KERNEL_OK")
</pallas_src>

<mosaic_0001>
module attributes {stable_mosaic.version = 11 : i64} {
  func.func @mlp_kernel(%arg0: memref<8x128xf32, #tpu.memory_space<vmem>>, %arg1: memref<128x128xf32, #tpu.memory_space<vmem>>, %arg2: memref<8x128xf32, #tpu.memory_space<vmem>>, %arg3: memref<128x128xf32, #tpu.memory_space<vmem>>, %arg4: memref<8x128xf32, #tpu.memory_space<vmem>>, %arg5: memref<8x128xf32, #tpu.memory_space<vmem>>) attributes {dimension_semantics = [], scalar_prefetch = 0 : i64, scratch_operands = 0 : i64, tpu.core_type = #tpu.core_type<tc>} {
    %c0 = arith.constant 0 : index
    %c0_0 = arith.constant 0 : index
    %0 = vector.load %arg0[%c0, %c0_0] : memref<8x128xf32, #tpu.memory_space<vmem>>, vector<8x128xf32>
    %c0_1 = arith.constant 0 : index
    %c0_2 = arith.constant 0 : index
    %1 = vector.load %arg1[%c0_1, %c0_2] : memref<128x128xf32, #tpu.memory_space<vmem>>, vector<128x128xf32>
    %cst = arith.constant dense<0.000000e+00> : vector<8x128xf32>
    %2 = tpu.matmul %0, %1, %cst {dimension_numbers = #tpu.dot_dimension_numbers<[1], [0], [0], [1], [0, 0, 1, 1], [], []>} : vector<8x128xf32>, vector<128x128xf32>, vector<8x128xf32> -> vector<8x128xf32>
    %c0_3 = arith.constant 0 : index
    %c0_4 = arith.constant 0 : index
    %3 = vector.load %arg2[%c0_3, %c0_4] : memref<8x128xf32, #tpu.memory_space<vmem>>, vector<8x128xf32>
    %4 = arith.addf %2, %3 : vector<8x128xf32>
    %cst_5 = arith.constant 0.000000e+00 : f32
    %5 = vector.broadcast %cst_5 : f32 to vector<8x128xf32>
    %6 = arith.maximumf %4, %5 : vector<8x128xf32>
    %c0_6 = arith.constant 0 : index
    %c0_7 = arith.constant 0 : index
    %7 = vector.load %arg3[%c0_6, %c0_7] : memref<128x128xf32, #tpu.memory_space<vmem>>, vector<128x128xf32>
    %cst_8 = arith.constant dense<0.000000e+00> : vector<8x128xf32>
    %8 = tpu.matmul %6, %7, %cst_8 {dimension_numbers = #tpu.dot_dimension_numbers<[1], [0], [0], [1], [0, 0, 1, 1], [], []>} : vector<8x128xf32>, vector<128x128xf32>, vector<8x128xf32> -> vector<8x128xf32>
    %c0_9 = arith.constant 0 : index
    %c0_10 = arith.constant 0 : index
    %9 = vector.load %arg4[%c0_9, %c0_10] : memref<8x128xf32, #tpu.memory_space<vmem>>, vector<8x128xf32>
    %10 = arith.addf %8, %9 : vector<8x128xf32>
    %c0_11 = arith.constant 0 : index
    %c0_12 = arith.constant 0 : index
    %11 = vector.load %arg5[%c0_11, %c0_12] : memref<8x128xf32, #tpu.memory_space<vmem>>, vector<8x128xf32>
    tpu.vector_store %arg5[%c0_11, %c0_12], %10 {strides = array<i32>} : memref<8x128xf32, #tpu.memory_space<vmem>>, vector<8x128xf32>,
    return
  }
}

</mosaic_0001>

<llo_original>
// kernel: neural_net_forward.1
$region0: #{neural_net_forward.1}
  #allocation0 [shape = 'u32[]', space=smem, size = 0x4, offset = 0x4, fixed_abs, tag = 'smem constant byte address 0x4 - core index']
  #allocation1 [shape = 'u32[144,128]{1,0:T(1,128)}', space=vmem, size = 0x12000, scoped, tag = 'internal scratch']
  %s0 = inlined_call_operand.vmem [shape: f32[8,128], index: 0, kind: input, shape index: {}]
  %s1 = inlined_call_operand.vmem [shape: f32[128,128], index: 1, kind: input, shape index: {}]
  %s2 = inlined_call_operand.vmem [shape: f32[8,128], index: 2, kind: input, shape index: {}]
  %s3 = inlined_call_operand.vmem [shape: f32[128,128], index: 3, kind: input, shape index: {}]
  %s4 = inlined_call_operand.vmem [shape: f32[8,128], index: 4, kind: input, shape index: {}]
  %s5 = inlined_call_operand.vmem [shape: f32[8,128], index: 5, kind: output, shape index: {}]
  %s6 = sld [smem:[#allocation0]]
  $region30: #{neural_net_forward.1} parent=0
    _
  %s8 = ssub.s32 1, %s6
  %s9 = scalar_select 0, %s8, %s6
  // Predicated region
  $region2: #{neural_net_forward.1} parent=0 // pred_check
    _
  $region3: #{neural_net_forward.1} parent=0 // pred_check_branch
    %11 = sbr.rel (0) target = $region5
  $region4: #{neural_net_forward.1} parent=0 // pred_region
    _
  $region5: #{neural_net_forward.1} parent=0 // pred_fallthru
    _
  // Predicated region
  $region6: #{neural_net_forward.1} parent=0 // pred_check
    _
  $region7: #{neural_net_forward.1} parent=0 // pred_check_branch
    %13 = sbr.rel (0) target = $region9
  $region8: #{neural_net_forward.1} parent=0 // pred_region
    _
  $region9: #{neural_net_forward.1} parent=0 // pred_fallthru
    _
  // Predicated region
  $region10: #{neural_net_forward.1} parent=0 // pred_check
    _
  $region11: #{neural_net_forward.1} parent=0 // pred_check_branch
    %15 = sbr.rel (0) target = $region13
  $region12: #{neural_net_forward.1} parent=0 // pred_region
    _
  $region13: #{neural_net_forward.1} parent=0 // pred_fallthru
    _
  // Predicated region
  $region14: #{neural_net_forward.1} parent=0 // pred_check
    _
  $region15: #{neural_net_forward.1} parent=0 // pred_check_branch
    %17 = sbr.rel (0) target = $region17
  $region16: #{neural_net_forward.1} parent=0 // pred_region
    _
  $region17: #{neural_net_forward.1} parent=0 // pred_fallthru
    _
  // Predicated region
  $region18: #{neural_net_forward.1} parent=0 // pred_check
    _
  $region19: #{neural_net_forward.1} parent=0 // pred_check_branch
    %19 = sbr.rel (0) target = $region21
  $region20: #{neural_net_forward.1} parent=0 // pred_region
    _
  $region21: #{neural_net_forward.1} parent=0 // pred_fallthru
    _
  %v20 = vld [vmem:[%s0] sm:$0xff]
  %v21 = vld [vmem:[%s1] sm:$0xff]
  %v22 = vld [vmem:[%s1 + $0x8] sm:$0xff]
  %v23 = vld [vmem:[%s1 + $0x10] sm:$0xff]
  %v24 = vld [vmem:[%s1 + $0x18] sm:$0xff]
  %v25 = vld [vmem:[%s1 + $0x20] sm:$0xff]
  %v26 = vld [vmem:[%s1 + $0x28] sm:$0xff]
  %v27 = vld [vmem:[%s1 + $0x30] sm:$0xff]
  %v28 = vld [vmem:[%s1 + $0x38] sm:$0xff]
  %v29 = vld [vmem:[%s1 + $0x40] sm:$0xff]
  %v30 = vld [vmem:[%s1 + $0x48] sm:$0xff]
  %v31 = vld [vmem:[%s1 + $0x50] sm:$0xff]
  %v32 = vld [vmem:[%s1 + $0x58] sm:$0xff]
  %v33 = vld [vmem:[%s1 + $0x60] sm:$0xff]
  %v34 = vld [vmem:[%s1 + $0x68] sm:$0xff]
  %v35 = vld [vmem:[%s1 + $0x70] sm:$0xff]
  %v36 = vld [vmem:[%s1 + $0x78] sm:$0xff]
  %v37 = vld [vmem:[%s2] sm:$0xff]
  %38 = vmatprep.subr.mxu0 0.0
  %39 = vmatpush1.msra.mxu0 %v36
  %40 = vmatprep.subr.mxu0 0.0
  %41 = vmatpush1.msra.mxu0 %v35
  %42 = vmatprep.subr.mxu0 0.0
  %43 = vmatpush1.msra.mxu0 %v34
  %44 = vmatprep.subr.mxu0 0.0
  %45 = vmatpush1.msra.mxu0 %v33
  %46 = vmatprep.subr.mxu0 0.0
  %47 = vmatpush1.msra.mxu0 %v32
  %48 = vmatprep.subr.mxu0 0.0
  %49 = vmatpush1.msra.mxu0 %v31
  %50 = vmatprep.subr.mxu0 0.0
  %51 = vmatpush1.msra.mxu0 %v30
  %52 = vmatprep.subr.mxu0 0.0
  %53 = vmatpush1.msra.mxu0 %v29
  %54 = vmatprep.subr.mxu0 0.0
  %55 = vmatpush1.msra.mxu0 %v28
  %56 = vmatprep.subr.mxu0 0.0
  %57 = vmatpush1.msra.mxu0 %v27
  %58 = vmatprep.subr.mxu0 0.0
  %59 = vmatpush1.msra.mxu0 %v26
  %60 = vmatprep.subr.mxu0 0.0
  %61 = vmatpush1.msra.mxu0 %v25
  %62 = vmatprep.subr.mxu0 0.0
  %63 = vmatpush1.msra.mxu0 %v24
  %64 = vmatprep.subr.mxu0 0.0
  %65 = vmatpush1.msra.mxu0 %v23
  %66 = vmatprep.subr.mxu0 0.0
  %67 = vmatpush1.msra.mxu0 %v22
  %68 = vmatprep.subr.mxu0 0.0
  %69 = vmatpush1.msra.mxu0 %v21
  %70 = vmatprep.subr.mxu0 0.0
  %71 = vmatpush2.msra.mxu0 0.0
  %72 = vmatprep.subr.mxu0 0.0
  %73 = vmatpush2.msra.mxu0 0.0
  %74 = vmatprep.subr.mxu0 0.0
  %75 = vmatpush2.msra.mxu0 0.0
  %76 = vmatprep.subr.mxu0 0.0
  %77 = vmatpush2.msra.mxu0 0.0
  %78 = vmatprep.subr.mxu0 0.0
  %79 = vmatpush2.msra.mxu0 0.0
  %80 = vmatprep.subr.mxu0 0.0
  %81 = vmatpush2.msra.mxu0 0.0
  %82 = vmatprep.subr.mxu0 0.0
  %83 = vmatpush2.msra.mxu0 0.0
  %84 = vmatprep.subr.mxu0 0.0
  %85 = vmatpush2.msra.mxu0 0.0
  %86 = vmatprep.subr.mxu0 0.0
  %87 = vmatpush2.msra.mxu0 0.0
  %88 = vmatprep.subr.mxu0 0.0
  %89 = vmatpush2.msra.mxu0 0.0
  %90 = vmatprep.subr.mxu0 0.0
  %91 = vmatpush2.msra.mxu0 0.0
  %92 = vmatprep.subr.mxu0 0.0
  %93 = vmatpush2.msra.mxu0 0.0
  %94 = vmatprep.subr.mxu0 0.0
  %95 = vmatpush2.msra.mxu0 0.0
  %96 = vmatprep.subr.mxu0 0.0
  %97 = vmatpush2.msra.mxu0 0.0
  %98 = vmatprep.subr.mxu0 0.0
  %99 = vmatpush2.msra.mxu0 0.0
  %100 = vmatprep.subr.mxu0 0.0
  %101 = vmatpush2.msra.mxu0 0.0
  %102 = vmatprep.mubr.f32.mxu0 0.0
  %103 = vmatmul.mubr.f32.gmra.mxu0 %v20
  %v104 = vpop.f32.mrf.mxu0
  %v105 = vadd.f32 %v37, %v104
  %v106 = vpop.f32.mrf.mxu0
  %107 = vdwg.mxu0
  %v108 = vmax.f32 %v105, 0.0
  %v109 = vld [vmem:[%s3] sm:$0xff]
  %v110 = vld [vmem:[%s3 + $0x8] sm:$0xff]
  %v111 = vld [vmem:[%s3 + $0x10] sm:$0xff]
  %v112 = vld [vmem:[%s3 + $0x18] sm:$0xff]
  %v113 = vld [vmem:[%s3 + $0x20] sm:$0xff]
  %v114 = vld [vmem:[%s3 + $0x28] sm:$0xff]
  %v115 = vld [vmem:[%s3 + $0x30] sm:$0xff]
  %v116 = vld [vmem:[%s3 + $0x38] sm:$0xff]
  %v117 = vld [vmem:[%s3 + $0x40] sm:$0xff]
  %v118 = vld [vmem:[%s3 + $0x48] sm:$0xff]
  %v119 = vld [vmem:[%s3 + $0x50] sm:$0xff]
  %v120 = vld [vmem:[%s3 + $0x58] sm:$0xff]
  %v121 = vld [vmem:[%s3 + $0x60] sm:$0xff]
  %v122 = vld [vmem:[%s3 + $0x68] sm:$0xff]
  %v123 = vld [vmem:[%s3 + $0x70] sm:$0xff]
  %v124 = vld [vmem:[%s3 + $0x78] sm:$0xff]
  %v125 = vld [vmem:[%s4] sm:$0xff]
  %126 = vmatprep.subr.mxu0 0.0
  %127 = vmatpush1.msra.mxu0 %v124
  %128 = vmatprep.subr.mxu0 0.0
  %129 = vmatpush1.msra.mxu0 %v123
  %130 = vmatprep.subr.mxu0 0.0
  %131 = vmatpush1.msra.mxu0 %v122
  %132 = vmatprep.subr.mxu0 0.0
  %133 = vmatpush1.msra.mxu0 %v121
  %134 = vmatprep.subr.mxu0 0.0
  %135 = vmatpush1.msra.mxu0 %v120
  %136 = vmatprep.subr.mxu0 0.0
  %137 = vmatpush1.msra.mxu0 %v119
  %138 = vmatprep.subr.mxu0 0.0
  %139 = vmatpush1.msra.mxu0 %v118
  %140 = vmatprep.subr.mxu0 0.0
  %141 = vmatpush1.msra.mxu0 %v117
  %142 = vmatprep.subr.mxu0 0.0
  %143 = vmatpush1.msra.mxu0 %v116
  %144 = vmatprep.subr.mxu0 0.0
  %145 = vmatpush1.msra.mxu0 %v115
  %146 = vmatprep.subr.mxu0 0.0
  %147 = vmatpush1.msra.mxu0 %v114
  %148 = vmatprep.subr.mxu0 0.0
  %149 = vmatpush1.msra.mxu0 %v113
  %150 = vmatprep.subr.mxu0 0.0
  %151 = vmatpush1.msra.mxu0 %v112
  %152 = vmatprep.subr.mxu0 0.0
  %153 = vmatpush1.msra.mxu0 %v111
  %154 = vmatprep.subr.mxu0 0.0
  %155 = vmatpush1.msra.mxu0 %v110
  %156 = vmatprep.subr.mxu0 0.0
  %157 = vmatpush1.msra.mxu0 %v109
  %158 = vmatprep.subr.mxu0 0.0
  %159 = vmatpush2.msra.mxu0 0.0
  %160 = vmatprep.subr.mxu0 0.0
  %161 = vmatpush2.msra.mxu0 0.0
  %162 = vmatprep.subr.mxu0 0.0
  %163 = vmatpush2.msra.mxu0 0.0
  %164 = vmatprep.subr.mxu0 0.0
  %165 = vmatpush2.msra.mxu0 0.0
  %166 = vmatprep.subr.mxu0 0.0
  %167 = vmatpush2.msra.mxu0 0.0
  %168 = vmatprep.subr.mxu0 0.0
  %169 = vmatpush2.msra.mxu0 0.0
  %170 = vmatprep.subr.mxu0 0.0
  %171 = vmatpush2.msra.mxu0 0.0
  %172 = vmatprep.subr.mxu0 0.0
  %173 = vmatpush2.msra.mxu0 0.0
  %174 = vmatprep.subr.mxu0 0.0
  %175 = vmatpush2.msra.mxu0 0.0
  %176 = vmatprep.subr.mxu0 0.0
  %177 = vmatpush2.msra.mxu0 0.0
  %178 = vmatprep.subr.mxu0 0.0
  %179 = vmatpush2.msra.mxu0 0.0
  %180 = vmatprep.subr.mxu0 0.0
  %181 = vmatpush2.msra.mxu0 0.0
  %182 = vmatprep.subr.mxu0 0.0
  %183 = vmatpush2.msra.mxu0 0.0
  %184 = vmatprep.subr.mxu0 0.0
  %185 = vmatpush2.msra.mxu0 0.0
  %186 = vmatprep.subr.mxu0 0.0
  %187 = vmatpush2.msra.mxu0 0.0
  %188 = vmatprep.subr.mxu0 0.0
  %189 = vmatpush2.msra.mxu0 0.0
  %190 = vmatprep.mubr.f32.mxu0 0.0
  %191 = vmatmul.mubr.f32.gmra.mxu0 %v108
  %v192 = vpop.f32.mrf.mxu0
  %v193 = vadd.f32 %v125, %v192
  %v194 = vpop.f32.mrf.mxu0
  %195 = vdwg.mxu0
  %196 = vst [vmem:[%s5] sm:$0xff] %v193
  // Predicated region
  $region22: #{neural_net_forward.1} parent=0 // pred_check
    _
  $region23: #{neural_net_forward.1} parent=0 // pred_check_branch
    %198 = sbr.rel (0) target = $region25
  $region24: #{neural_net_forward.1} parent=0 // pred_region
    _
  $region25: #{neural_net_forward.1} parent=0 // pred_fallthru
    _
  // Predicated region
  $region26: #{neural_net_forward.1} parent=0 // pred_check
    _
  $region27: #{neural_net_forward.1} parent=0 // pred_check_branch
    %200 = sbr.rel (0) target = $region29
  $region28: #{neural_net_forward.1} parent=0 // pred_region
    _
  $region29: #{neural_net_forward.1} parent=0 // pred_fallthru
    _

</llo_original>
